<compile_context>
chip_gen: v7x
topology: tpu7x:2x2x1
jax: 0.10.0
libtpu: 0.0.40
codegen_flags: <defaults>
</compile_context>

<pallas_src>
import math
import functools

import jax
import jax.numpy as jnp
from jax import lax
from jax.experimental import pallas as pl
from jax.experimental.pallas import tpu as pltpu


def _round_up(x, mult):
    return ((x + mult - 1) // mult) * mult


def _largest_divisor_leq(n, cap):
    for d in range(min(n, cap), 0, -1):
        if n % d == 0:
            return d
    return 1


# --------------------------------------------------------------------------
# Input-projection GEMM over ALL time steps at once (hoisted out of recurrence)
#   x2d : (T*N, n_in) f32,  w : (n_in, 4km+k) bf16,  b : (1, 4km+k) f32
#   out : (T*N, 4km+k) f32   (biases folded in)
# --------------------------------------------------------------------------
def _input_proj_kernel(x_ref, w_ref, b_ref, o_ref):
    o_ref[...] = (jnp.dot(x_ref[...].astype(jnp.bfloat16), w_ref[...],
                          preferred_element_type=jnp.float32) + b_ref[...])


def run_input_proj(x2d, w, b):
    R = x2d.shape[0]
    G = w.shape[1]
    return pl.pallas_call(
        _input_proj_kernel,
        out_shape=jax.ShapeDtypeStruct((R, G), jnp.float32),
        in_specs=[pl.BlockSpec(memory_space=pltpu.MemorySpace.VMEM)] * 3,
        out_specs=pl.BlockSpec(memory_space=pltpu.MemorySpace.VMEM),
    )(x2d, w, b)


# --------------------------------------------------------------------------
# Recurrent k-cell LSTM layer kernel: grid over time blocks of Tb steps,
# fused (m, 4km+k) recurrent matmul, lane-dense combined output [z|qz|h|pad].
# --------------------------------------------------------------------------
def _klstm_layer_kernel(xproj_ref, mask_ref, h0_ref, c0_ref, invtau_ref,
                        wh_ref, out_ref, cfin_ref, h_state, c_state,
                        *, hidden, k_cells, t_block, out_pad):
    m, k, Tb = hidden, k_cells, t_block
    km = k * m
    G4 = 4 * km

    @pl.when(pl.program_id(0) == 0)
    def _():
        h_state[...] = h0_ref[...]
        c_state[...] = c0_ref[...]

    inv_tau = invtau_ref[0, 0]                       # scalar from SMEM
    n_rows = h_state.shape[0]
    pad = jnp.zeros((n_rows, out_pad), jnp.float32) if out_pad > 0 else None

    def step(tt, carry):
        h_prev, c_prev = carry
        # x-side projection (gates + logits, biases folded) precomputed outside.
        xp = xproj_ref[tt]                            # (N, 4km+k) f32
        # single fused recurrent matmul: h @ [W_hh_grouped | W_zh]
        hp = jnp.dot(h_prev.astype(jnp.bfloat16), wh_ref[...],
                     preferred_element_type=jnp.float32)
        proj = xp + hp                                # (N, 4km+k)
        gates = proj[:, :G4]                          # (N, 4km)   [i | f | g | o]
        logits = proj[:, G4:G4 + k]                   # (N, k)

        # shared softmax work between q_z and z = softmax(logits / tau)
        lmax = jnp.max(logits, axis=-1, keepdims=True)
        sh = logits - lmax
        e_q = jnp.exp(sh)
        q_z = e_q * pl.reciprocal(jnp.sum(e_q, axis=-1, keepdims=True), approx=True)
        e_z = jnp.exp(sh * inv_tau)
        z = e_z * pl.reciprocal(jnp.sum(e_z, axis=-1, keepdims=True), approx=True)

        # batched gate nonlinearities over all k sub-cells at once
        i_a = jax.nn.sigmoid(gates[:, 0:km])
        f_a = jax.nn.sigmoid(gates[:, km:2 * km])
        g_a = jnp.tanh(gates[:, 2 * km:3 * km])
        o_a = jax.nn.sigmoid(gates[:, 3 * km:4 * km])
        c_rep = jnp.concatenate([c_prev] * k, axis=1)           # (N, km)
        c_all = f_a * c_rep + i_a * g_a                         # (N, km)
        h_all = o_a * jnp.tanh(c_all)                           # (N, km)

        # soft selection over the k sub-cells
        c_new = jnp.zeros_like(c_prev)
        h_new = jnp.zeros_like(h_prev)
        for j in range(k):
            zj = z[:, j:j + 1]
            c_new = c_new + zj * c_all[:, j * m:(j + 1) * m]
            h_new = h_new + zj * h_all[:, j * m:(j + 1) * m]

        # sequence-length masking exactly as in _forward_rnn
        msk = mask_ref[tt]                                      # (N, 1) f32
        h_t = h_new * msk + h_prev * (1.0 - msk)
        c_t = c_new * msk + c_prev * (1.0 - msk)

        # lane-dense combined write: [z | q_z | h | zero pad] -> width P (>=128)
        pieces = [z, q_z, h_t]
        if out_pad > 0:
            pieces.append(pad)
        out_ref[tt] = jnp.concatenate(pieces, axis=1)
        return (h_t, c_t)

    h_fin, c_fin = lax.fori_loop(0, Tb, step,
                                 (h_state[...], c_state[...]), unroll=True)
    h_state[...] = h_fin
    c_state[...] = c_fin
    cfin_ref[...] = c_fin          # resident output; last grid step wins


def run_klstm_layer(xproj_tm, mask_tm, h0, c0, inv_tau_arr, w_h_fused,
                    *, hidden, k_cells, t_block, out_width):
    T, N, G = xproj_tm.shape
    m, k, Tb, P = hidden, k_cells, t_block, out_width
    kernel = functools.partial(_klstm_layer_kernel, hidden=m, k_cells=k,
                               t_block=Tb, out_pad=P - (2 * k + m))

    grid_spec = pltpu.PrefetchScalarGridSpec(
        num_scalar_prefetch=0,
        grid=(T // Tb,),
        in_specs=[
            pl.BlockSpec((Tb, N, G), lambda tb: (tb, 0, 0)),      # xproj (time-major)
            pl.BlockSpec((Tb, N, 1), lambda tb: (tb, 0, 0)),      # time mask
            pl.BlockSpec((N, m), lambda tb: (0, 0)),              # h0
            pl.BlockSpec((N, m), lambda tb: (0, 0)),              # c0
            pl.BlockSpec(memory_space=pltpu.MemorySpace.SMEM),    # 1/tau scalar
            pl.BlockSpec((m, G), lambda tb: (0, 0)),              # fused W_hh|W_zh (bf16)
        ],
        out_specs=[
            pl.BlockSpec((Tb, N, P), lambda tb: (tb, 0, 0)),      # [z|qz|h|pad]
            pl.BlockSpec((N, m), lambda tb: (0, 0)),              # final c_t
        ],
        scratch_shapes=[pltpu.VMEM((N, m), jnp.float32),
                        pltpu.VMEM((N, m), jnp.float32)],
    )

    return pl.pallas_call(
        kernel,
        grid_spec=grid_spec,
        out_shape=(
            jax.ShapeDtypeStruct((T, N, P), jnp.float32),
            jax.ShapeDtypeStruct((N, m), jnp.float32),
        ),
        compiler_params=pltpu.CompilerParams(dimension_semantics=("arbitrary",)),
    )(xproj_tm, mask_tm, h0, c0, inv_tau_arr, w_h_fused)


# --------------------------------------------------------------------------
# Final fully-connected layer (tiny, single-block kernel)
# --------------------------------------------------------------------------
def _fc_kernel(h_ref, w_ref, b_ref, o_ref):
    o_ref[...] = (jnp.dot(h_ref[...], w_ref[...],
                          preferred_element_type=jnp.float32) + b_ref[...])


def run_fc(h_final, w_fc, b_fc):
    N = h_final.shape[0]
    out_size = w_fc.shape[1]
    return pl.pallas_call(
        _fc_kernel,
        out_shape=jax.ShapeDtypeStruct((N, out_size), jnp.float32),
        in_specs=[pl.BlockSpec(memory_space=pltpu.MemorySpace.VMEM)] * 3,
        out_specs=pl.BlockSpec(memory_space=pltpu.MemorySpace.VMEM),
    )(h_final, w_fc, b_fc)


# --------------------------------------------------------------------------
# Parameter init (deterministic; fused weight layout used by the kernels):
#   w_x : (in_sz, 4km + k)  bf16, columns = [i(km) | f(km) | g(km) | o(km) | z(k)]
#   b_x : (1, 4km + k)      f32   (b and b_z folded together)
#   w_h : (m, 4km + k)      bf16  (W_hh grouped the same way, then W_zh)
# --------------------------------------------------------------------------
def init_params(key, input_size, hidden_size, k_cells, output_size, num_layers):
    m, k = hidden_size, k_cells
    G = 4 * k * m + k
    stdv = 1.0 / math.sqrt(m)
    params = {"layers": []}
    for layer in range(num_layers):
        in_sz = input_size if layer == 0 else m
        key, k0, k1, k2 = jax.random.split(key, 4)
        w_x = jax.random.uniform(k0, (in_sz, G), jnp.float32, -stdv, stdv)
        w_h = jax.random.uniform(k1, (m, G), jnp.float32, -stdv, stdv)
        b_x = jax.random.uniform(k2, (1, G), jnp.float32, -stdv, stdv)
        params["layers"].append({
            "w_x": w_x.astype(jnp.bfloat16),
            "w_h": w_h.astype(jnp.bfloat16),
            "b_x": b_x,
        })
    key, kw, kb = jax.random.split(key, 3)
    params["fc_w"] = jax.random.uniform(kw, (m, output_size), jnp.float32, -stdv, stdv)
    params["fc_b"] = jax.random.uniform(kb, (1, output_size), jnp.float32, -stdv, stdv)
    return params


# --------------------------------------------------------------------------
# Full forward matching LSTM.forward()
# (every layer starts from the same initial s_t, exactly as in the module)
# --------------------------------------------------------------------------
def lstm_forward(params, x, tau, length=None, s_t=None, is_training=True,
                 *, hidden_size, k_cells, num_layers, t_block=None):
    N, T, _ = x.shape
    m, k = hidden_size, k_cells
    if length is None:
        length = jnp.full((N,), T, dtype=jnp.int32)
    if s_t is None:
        zeros = jnp.zeros((N, m), jnp.float32)
        s_t = (zeros, zeros)
    h0, c0 = s_t

    Tb = t_block if t_block is not None else _largest_divisor_leq(T, 8)

    # time mask (T, N, 1):  mask[t, n] = (t < length[n])
    t_idx = jnp.arange(T, dtype=jnp.int32)[:, None]
    mask_tm = (t_idx < length.astype(jnp.int32)[None, :]).astype(jnp.float32)[..., None]

    inv_tau_arr = jnp.full((1, 1), 1.0 / float(tau), dtype=jnp.float32)
    P = _round_up(2 * k + m, 128)        # padded, lane-dense combined output width

    x_tm = jnp.transpose(x, (1, 0, 2))   # -> time-major (T, N, n)
    all_h_t, all_c_t = [], []
    z_tm = qz_tm = h_tm = None
    layer_in = x_tm
    for layer in range(num_layers):
        p = params["layers"][layer]
        n_in = layer_in.shape[-1]
        # hoisted input-projection GEMM over all T*N rows (biases folded)
        xproj = run_input_proj(layer_in.reshape(T * N, n_in), p["w_x"], p["b_x"])
        xproj = xproj.reshape(T, N, -1)
        comb, c_fin = run_klstm_layer(
            xproj, mask_tm, h0, c0, inv_tau_arr, p["w_h"],
            hidden=m, k_cells=k, t_block=Tb, out_width=P)
        z_tm = comb[:, :, 0:k]
        qz_tm = comb[:, :, k:2 * k]
        h_tm = comb[:, :, 2 * k:2 * k + m]
        h_fin = h_tm[-1]
        # dropout_prob == 0.0 -> identity.
        # TODO(synk): stateful dropout (nn.Dropout) for dropout_prob > 0 in training mode.
        layer_in = h_tm
        all_h_t.append(h_fin)
        all_c_t.append(c_fin)

    output = run_fc(all_h_t[-1], params["fc_w"], params["fc_b"])

    # back to PyTorch batch-major (N, T, ...)
    z_out = jnp.transpose(z_tm, (1, 0, 2))
    qz_out = jnp.transpose(qz_tm, (1, 0, 2))
    h_out = jnp.transpose(h_tm, (1, 0, 2))
    return output, z_out, qz_out, h_out, (jnp.stack(all_h_t, 0), jnp.stack(all_c_t, 0))


# --------------------------------------------------------------------------
if __name__ == "__main__":
    # small shapes: batch=2, seq=8, input=4, hidden=32, k_cells=2, output=4, layers=2
    N, T, n = 2, 8, 4
    m, k, out_size, num_layers = 32, 2, 4, 2
    tau = 0.7

    key = jax.random.PRNGKey(0)
    key, kx = jax.random.split(key)
    x = jax.random.normal(kx, (N, T, n), dtype=jnp.float32)
    length = jnp.array([T, 5], dtype=jnp.int32)   # exercise the time mask

    params = init_params(jax.random.PRNGKey(42), n, m, k, out_size, num_layers)

    output, z_T, qz_T, h_T, (all_h_t, all_c_t) = lstm_forward(
        params, x, tau, length=length,
        hidden_size=m, k_cells=k, num_layers=num_layers)

    jax.block_until_ready((output, z_T, qz_T, h_T, all_h_t, all_c_t))

    assert output.shape == (N, out_size)
    assert z_T.shape == (N, T, k) and qz_T.shape == (N, T, k)
    assert h_T.shape == (N, T, m)
    assert all_h_t.shape == (num_layers, N, m) and all_c_t.shape == (num_layers, N, m)
    assert bool(jnp.all(jnp.isfinite(output)))
    assert bool(jnp.all(jnp.isfinite(h_T)))
    # soft selections are valid probability distributions
    assert bool(jnp.all(jnp.abs(jnp.sum(z_T, -1) - 1.0) < 1e-2))
    assert bool(jnp.all(jnp.abs(jnp.sum(qz_T, -1) - 1.0) < 1e-2))

    print("KERNEL_OK")
</pallas_src>

<mosaic_0001>
module attributes {stable_mosaic.version = 11 : i64} {
  func.func @_input_proj_kernel(%arg0: memref<16x4xf32, #tpu.memory_space<vmem>>, %arg1: memref<4x258xbf16, #tpu.memory_space<vmem>>, %arg2: memref<1x258xf32, #tpu.memory_space<vmem>>, %arg3: memref<16x258xf32, #tpu.memory_space<vmem>>) attributes {dimension_semantics = [], scalar_prefetch = 0 : i64, scratch_operands = 0 : i64, tpu.core_type = #tpu.core_type<tc>} {
    %c0 = arith.constant 0 : index
    %c0_0 = arith.constant 0 : index
    %0 = vector.load %arg0[%c0, %c0_0] : memref<16x4xf32, #tpu.memory_space<vmem>>, vector<16x4xf32>
    %1 = arith.truncf %0 : vector<16x4xf32> to vector<16x4xbf16>
    %c0_1 = arith.constant 0 : index
    %c0_2 = arith.constant 0 : index
    %2 = vector.load %arg1[%c0_1, %c0_2] : memref<4x258xbf16, #tpu.memory_space<vmem>>, vector<4x258xbf16>
    %cst = arith.constant dense<0.000000e+00> : vector<16x258xf32>
    %3 = tpu.matmul %1, %2, %cst {dimension_numbers = #tpu.dot_dimension_numbers<[1], [0], [0], [1], [0, 0, 1, 1], [], []>} : vector<16x4xbf16>, vector<4x258xbf16>, vector<16x258xf32> -> vector<16x258xf32>
    %c0_3 = arith.constant 0 : index
    %c0_4 = arith.constant 0 : index
    %4 = vector.load %arg2[%c0_3, %c0_4] : memref<1x258xf32, #tpu.memory_space<vmem>>, vector<1x258xf32>
    %5 = vector.broadcast %4 : vector<1x258xf32> to vector<16x258xf32>
    %6 = arith.addf %3, %5 : vector<16x258xf32>
    %c0_5 = arith.constant 0 : index
    %c0_6 = arith.constant 0 : index
    %7 = vector.load %arg3[%c0_5, %c0_6] : memref<16x258xf32, #tpu.memory_space<vmem>>, vector<16x258xf32>
    tpu.vector_store %arg3[%c0_5, %c0_6], %6 {strides = array<i32>} : memref<16x258xf32, #tpu.memory_space<vmem>>, vector<16x258xf32>,
    return
  }
}

</mosaic_0001>

<llo_original>
// kernel: tpu_custom_call.1
$region0: #{tpu_custom_call.1}
  #allocation0 [shape = 'u32[]', space=smem, size = 0x4, offset = 0x4, fixed_abs, tag = 'smem constant byte address 0x4 - core index']
  #allocation1 [shape = 'u32[144,128]{1,0:T(1,128)}', space=vmem, size = 0x12000, scoped, tag = 'internal scratch']
  %s0 = inlined_call_operand.vmem [shape: f32[16,4], index: 0, kind: input, shape index: {}]
  %s1 = inlined_call_operand.vmem [shape: bf16[4,258], index: 1, kind: input, shape index: {}]
  %s2 = inlined_call_operand.vmem [shape: f32[1,258], index: 2, kind: input, shape index: {}]
  %s3 = inlined_call_operand.hbm [shape: f32[16,258], index: 3, kind: output, shape index: {}]
  %s4 = sld [smem:[#allocation0]]
  $region22: #{tpu_custom_call.1} parent=0
    _
  %s6 = ssub.s32 1, %s4
  %s7 = scalar_select 0, %s6, %s4
  $region1: #{tpu_custom_call.1} parent=0
    #allocation2 [shape = 'u8[24576]{0}', space=vmem, size = 0x6000, scoped, tag = 'output window, operand 0, single buffered']
    #allocation3 [shape = 's32[1]{0}', space=sflag, size = 0x4, scoped, tag = 'scoped memory for tpu_custom_call.1']
    %8 = vsyncpa [#allocation3], 0
    // Predicated region
    $region2: #{tpu_custom_call.1} parent=1 // pred_check
      _
    $region3: #{tpu_custom_call.1} parent=1 // pred_check_branch
      %10 = sbr.rel (0) target = $region5
    $region4: #{tpu_custom_call.1} parent=1 // pred_region
      _
    $region5: #{tpu_custom_call.1} parent=1 // pred_fallthru
      _
    // Predicated region
    $region6: #{tpu_custom_call.1} parent=1 // pred_check
      _
    $region7: #{tpu_custom_call.1} parent=1 // pred_check_branch
      %12 = sbr.rel (0) target = $region9
    $region8: #{tpu_custom_call.1} parent=1 // pred_region
      _
    $region9: #{tpu_custom_call.1} parent=1 // pred_fallthru
      _
    // Predicated region
    $region10: #{tpu_custom_call.1} parent=1 // pred_check
      _
    $region11: #{tpu_custom_call.1} parent=1 // pred_check_branch
      %14 = sbr.rel (0) target = $region13
    $region12: #{tpu_custom_call.1} parent=1 // pred_region
      _
    $region13: #{tpu_custom_call.1} parent=1 // pred_fallthru
      _
    %v16 = vld [vmem:[%s0] sm:$0xff]
    %v17 = vld [vmem:[%s0 + $0x8] sm:$0xff]
    %v18 = vpack.c.bf16 %v17, %v16
    %v19 = vld [vmem:[%s1] sm:$0x3f]
    %v20 = vld [vmem:[%s2] sm:$0x7]
    %v22 = vlaneseq
    %v23 = vshrl.u32 %v22, 7
    %v24 = vsub.s32 0, %v23
    %v25 = vrot.slane %v20, %v24
    %v26 = vlaneseq
    %v27 = vshrl.u32 %v26, 7
    %v28 = vsub.s32 1, %v27
    %v29 = vrot.slane %v20, %v28
    %v30 = vlaneseq
    %v31 = vshrl.u32 %v30, 7
    %v32 = vsub.s32 2, %v31
    %v33 = vrot.slane %v20, %v32
    %v38 = vcombine.high %v19, %v19
    %v40 = vunpack.c.l.s4 1983009808
    %v41 = vunpack.c.0.s8 %v40
    %v42 = vlaneseq
    %v43 = vshrl.u32 %v42, 7
    %v44 = vsub.s32 %v41, %v43
    %v45 = vrot.slane %v19, %v44
    %v47 = vunpack.c.l.s4 1983009808
    %v48 = vunpack.c.0.s8 %v47
    %v49 = vlaneseq
    %v50 = vshrl.u32 %v49, 7
    %v51 = vsub.s32 %v48, %v50
    %v52 = vrot.slane %v38, %v51
    %v53 = vcombine.high %v45, %v45
    %vm54 = vcmask 31744
    %v56 = vsel %vm54, %v18, 0
    %vm58 = vcmask 1041408
    %v60 = vsel %vm58, %v45, 0
    %v63 = vsel %vm58, %v53, 0
    %v66 = vsel %vm58, %v52, 0
    %68 = vmatprep.subr.bf16.mxu0 %v63
    %69 = vmatpush1.bf16.msra.mxu0 %v60
    %70 = vmatprep.subr.bf16.mxu0 0
    %71 = vmatpush1.bf16.msra.mxu0 0
    %72 = vmatprep.subr.bf16.mxu0 0
    %73 = vmatpush1.bf16.msra.mxu0 0
    %74 = vmatprep.subr.bf16.mxu0 0
    %75 = vmatpush1.bf16.msra.mxu0 0
    %76 = vmatprep.subr.bf16.mxu0 0
    %77 = vmatpush1.bf16.msra.mxu0 0
    %78 = vmatprep.subr.bf16.mxu0 0
    %79 = vmatpush1.bf16.msra.mxu0 0
    %80 = vmatprep.subr.bf16.mxu0 0
    %81 = vmatpush1.bf16.msra.mxu0 0
    %82 = vmatprep.subr.bf16.mxu0 0
    %83 = vmatpush1.bf16.msra.mxu0 0
    %84 = vmatprep.subr.bf16.mxu0 0
    %85 = vmatpush1.bf16.msra.mxu0 0
    %86 = vmatprep.subr.bf16.mxu0 0
    %87 = vmatpush1.bf16.msra.mxu0 0
    %88 = vmatprep.subr.bf16.mxu0 0
    %89 = vmatpush1.bf16.msra.mxu0 0
    %90 = vmatprep.subr.bf16.mxu0 0
    %91 = vmatpush1.bf16.msra.mxu0 0
    %92 = vmatprep.subr.bf16.mxu0 0
    %93 = vmatpush1.bf16.msra.mxu0 0
    %94 = vmatprep.subr.bf16.mxu0 0
    %95 = vmatpush1.bf16.msra.mxu0 0
    %96 = vmatprep.subr.bf16.mxu0 0
    %97 = vmatpush1.bf16.msra.mxu0 0
    %98 = vmatprep.subr.bf16.mxu0 0
    %99 = vmatpush1.bf16.msra.mxu0 0
    %100 = vmatprep.mubr.bf16.mxu0 0
    %101 = vmatmul.mubr.bf16.gmra.mrb[0].mxu0 %v56
    %v102 = vpop.f32.mrb[0].mxu0
    %v103 = vadd.f32 %v25, %v102
    %v104 = vpop.f32.mrb[0].mxu0
    %v105 = vadd.f32 %v29, %v104
    %v106 = vpop.f32.mrb[0].mxu0
    %v107 = vadd.f32 %v25, %v106
    %v108 = vpop.f32.mrb[0].mxu0
    %v109 = vadd.f32 %v29, %v108
    %110 = vdwg.mxu0
    %111 = vmatprep.subr.bf16.mxu0 0
    %112 = vmatpush1.bf16.msra.mxu0 %v66
    %113 = vmatprep.subr.bf16.mxu0 0
    %114 = vmatpush1.bf16.msra.mxu0 0
    %115 = vmatprep.subr.bf16.mxu0 0
    %116 = vmatpush1.bf16.msra.mxu0 0
    %117 = vmatprep.subr.bf16.mxu0 0
    %118 = vmatpush1.bf16.msra.mxu0 0
    %119 = vmatprep.subr.bf16.mxu0 0
    %120 = vmatpush1.bf16.msra.mxu0 0
    %121 = vmatprep.subr.bf16.mxu0 0
    %122 = vmatpush1.bf16.msra.mxu0 0
    %123 = vmatprep.subr.bf16.mxu0 0
    %124 = vmatpush1.bf16.msra.mxu0 0
    %125 = vmatprep.subr.bf16.mxu0 0
    %126 = vmatpush1.bf16.msra.mxu0 0
    %127 = vmatprep.subr.bf16.mxu0 0
    %128 = vmatpush1.bf16.msra.mxu0 0
    %129 = vmatprep.subr.bf16.mxu0 0
    %130 = vmatpush1.bf16.msra.mxu0 0
    %131 = vmatprep.subr.bf16.mxu0 0
    %132 = vmatpush1.bf16.msra.mxu0 0
    %133 = vmatprep.subr.bf16.mxu0 0
    %134 = vmatpush1.bf16.msra.mxu0 0
    %135 = vmatprep.subr.bf16.mxu0 0
    %136 = vmatpush1.bf16.msra.mxu0 0
    %137 = vmatprep.subr.bf16.mxu0 0
    %138 = vmatpush1.bf16.msra.mxu0 0
    %139 = vmatprep.subr.bf16.mxu0 0
    %140 = vmatpush1.bf16.msra.mxu0 0
    %141 = vmatprep.subr.bf16.mxu0 0
    %142 = vmatpush1.bf16.msra.mxu0 0
    %143 = vmatprep.mubr.bf16.mxu0 0
    %144 = vmatmul.mubr.bf16.gmra.mrb[0].mxu0 %v56
    %v145 = vpop.f32.mrb[0].mxu0
    %v146 = vadd.f32 %v33, %v145
    %v147 = vpop.f32.mrb[0].mxu0
    %v148 = vpop.f32.mrb[0].mxu0
    %v149 = vadd.f32 %v33, %v148
    %v150 = vpop.f32.mrb[0].mxu0
    %151 = vdwg.mxu0
    %152 = vst [vmem:[#allocation2] sm:$0xff] %v103
    %153 = vst [vmem:[#allocation2 + $0x8] sm:$0xff] %v105
    %vm154 = vcmask 15360
    %155 = vst.msk [vmem:[#allocation2 + $0x10] sm:$0xff] %vm154, %v146
    %156 = vst [vmem:[#allocation2 + $0x18] sm:$0xff] %v107
    %157 = vst [vmem:[#allocation2 + $0x20] sm:$0xff] %v109
    %158 = vst.msk [vmem:[#allocation2 + $0x28] sm:$0xff] %vm154, %v149
    // Predicated region
    $region14: #{tpu_custom_call.1} parent=1 // pred_check
      _
    $region15: #{tpu_custom_call.1} parent=1 // pred_check_branch
      %160 = sbr.rel (0) target = $region17
    $region16: #{tpu_custom_call.1} parent=1 // pred_region
      %s162 = ssub.s32 768, 768
      %163 = vsyncadd [#allocation3], %s162
      %s164 = sshll.u32 [#allocation2], 4
      %s165 = int_to_ptr.vmem [resolvable:$true] %s164
      %170 = dma.vmem_to_hbm [thread:$0]  %s165, 768, %s3, [#allocation3], 384, 384, 24
    $region17: #{tpu_custom_call.1} parent=1 // pred_fallthru
      _
    // Predicated region
    $region18: #{tpu_custom_call.1} parent=1 // pred_check
      _
    $region19: #{tpu_custom_call.1} parent=1 // pred_check_branch
      %172 = sbr.rel (0) target = $region21
    $region20: #{tpu_custom_call.1} parent=1 // pred_region
      %173 = dma.done [#allocation3], 768
    $region21: #{tpu_custom_call.1} parent=1 // pred_fallthru
      _
    %174 = vsyncpa [#allocation3], 1

</llo_original>
